<compile_context>
chip_gen: v5e
topology: v5e:2x2
jax: 0.10.0
libtpu: 0.0.40
codegen_flags: <defaults>
</compile_context>

<pallas_src>
import functools

import jax
import jax.numpy as jnp
from jax.experimental import pallas as pl
from jax.experimental.pallas import tpu as pltpu

LANES = 128
SUBLANES = 8


def _pow_const(x, p):
    """x ** p for a Python-constant exponent p. Returns None when p == 0 so the
    caller can skip the multiply entirely (alpha defaults to 0)."""
    p = float(p)
    if p == 0.0:
        return None
    if p.is_integer() and p > 0:
        n = int(p)
        result = None
        cur = x
        while n:
            if n & 1:
                result = cur if result is None else result * cur
            n >>= 1
            if n:
                cur = cur * cur
        return result
    return jnp.power(x, jnp.float32(p))


def _mul_pow(y, base, p):
    f = _pow_const(base, p)
    return y if f is None else y * f


def _pointwise_terms(pred, g, alpha, beta, eps):
    """Per-element focal-loss contribution and positive indicator (f32 in, f32 out).

    Shared between the kernel body and the pure-jnp ragged-tail path so both use
    exactly the same math.  Uses a single EUP log per element (the log argument is
    selected by the pos mask) and keeps everything as selects (never multiply-by-
    mask) so garbage in masked lanes can never propagate NaN/Inf.
    """
    pos = g == 1.0   # g.eq(1)
    neg = g < 1.0    # g.lt(1)
    lg = jnp.log(jnp.where(pos, pred, 1.0 - pred) + eps)
    pos_term = _mul_pow(lg, 1.0 - pred, alpha)                       # log(p+eps)*(1-p)^a
    neg_term = _mul_pow(_mul_pow(lg, pred, alpha), 1.0 - g, beta)    # log(1-p+eps)*p^a*(1-g)^b
    contrib = jnp.where(pos, pos_term, jnp.where(neg, neg_term, 0.0))
    return contrib, pos.astype(jnp.float32)


def _center_loss_kernel(pred_ref, gt_ref, loss_ref, npos_ref,
                        loss_acc, npos_acc,
                        *, alpha, beta, eps, rows, steps, tm, need_mask):
    j = pl.program_id(1)

    @pl.when(j == 0)
    def _init():
        loss_acc[...] = jnp.zeros_like(loss_acc)
        npos_acc[...] = jnp.zeros_like(npos_acc)

    pred = pred_ref[...].astype(jnp.float32)
    g = gt_ref[...].astype(jnp.float32)

    contrib, posf = _pointwise_terms(pred, g, alpha, beta, eps)

    if need_mask:
        # Only emitted when a block can be ragged (rows % tm != 0) or a clamped
        # duplicate (p_eff * steps > nblocks): (tm,1) column mask + one select per
        # accumulated quantity; invalid rows contribute exactly 0.
        blk = pl.program_id(0) * steps + j
        rid = blk * tm + jax.lax.broadcasted_iota(jnp.int32, (tm, 1), 0)
        valid = rid < rows
        contrib = jnp.where(valid, contrib, 0.0)
        posf = jnp.where(valid, posf, 0.0)

    # Fold (tm,128) -> (8,128) with pure vreg adds (layout-preserving reshape),
    # then a single small load+add+store into the resident accumulators.
    loss_acc[...] += jnp.sum(contrib.reshape(-1, SUBLANES, LANES), axis=0)
    npos_acc[...] += jnp.sum(posf.reshape(-1, SUBLANES, LANES), axis=0)

    @pl.when(j == pl.num_programs(1) - 1)
    def _finalize():
        loss_ref[...] = jnp.full((1, 1, 1), jnp.sum(loss_acc[...]), dtype=jnp.float32)
        npos_ref[...] = jnp.full((1, 1, 1), jnp.sum(npos_acc[...]), dtype=jnp.float32)


def center_loss(preds, gt, alpha=0, beta=4, eps=1e-8, *, preds_layout="NCHW",
                block_rows=2048, num_parallel=1, core_parallel=False):
    """CornerNet focal heatmap loss.

    preds: (N, C, H, W) when preds_layout="NCHW" (PyTorch conv layout, default) or
           (N, H, W, C) when preds_layout="NHWC" (skips the wrapper transpose).
    gt:    (N, H, W, C).
    Returns the scalar loss.
    """
    if preds_layout == "NCHW":
        N, C, H, W = preds.shape
        # One extra HBM pass over preds (see header comment); pass NHWC to avoid it.
        pred_nhwc = jnp.transpose(preds, (0, 2, 3, 1))
    elif preds_layout == "NHWC":
        N, H, W, C = preds.shape
        pred_nhwc = preds
    else:
        raise ValueError(f"unknown preds_layout: {preds_layout!r}")
    assert gt.shape == (N, H, W, C), (gt.shape, (N, H, W, C))

    alpha, beta, eps = float(alpha), float(beta), float(eps)
    total = N * H * W * C
    pred_flat = pred_nhwc.reshape(-1)
    gt_flat = gt.reshape(-1)

    # Main region = whole (8,128) row groups; the < 1024-element tail is pure jnp.
    rows = (total // (SUBLANES * LANES)) * SUBLANES
    main = rows * LANES

    loss_sum = jnp.float32(0.0)
    num_pos = jnp.float32(0.0)

    if rows > 0:
        if main == total:
            pred2 = pred_flat.reshape(rows, LANES)   # free reshape, no copies
            gt2 = gt_flat.reshape(rows, LANES)
        else:
            pred2 = pred_flat[:main].reshape(rows, LANES)
            gt2 = gt_flat[:main].reshape(rows, LANES)

        block_rows = max(SUBLANES, (int(block_rows) // SUBLANES) * SUBLANES)
        tm = min(block_rows, rows)                   # both multiples of 8
        nblocks = pl.cdiv(rows, tm)
        p_eff = max(1, min(int(num_parallel), nblocks))
        steps = pl.cdiv(nblocks, p_eff)
        need_mask = (rows % tm != 0) or (p_eff * steps != nblocks)

        def in_index(p, j):
            # Clamp so DMAs of trailing (fully masked) logical blocks stay in bounds.
            return (jnp.minimum(p * steps + j, nblocks - 1), 0)

        if core_parallel and p_eff > 1:
            lead_sem = pltpu.CORE_PARALLEL   # v7x: really shard across both TCs
        elif p_eff > 1:
            lead_sem = pltpu.PARALLEL
        else:
            lead_sem = pltpu.ARBITRARY

        # 2 inputs x 2 pipeline buffers per block + accumulators; explicit limit.
        in_bytes = tm * LANES * (pred2.dtype.itemsize + gt2.dtype.itemsize)
        vmem_limit = int(min(64 * 1024 * 1024, max(8 * 1024 * 1024, 3 * in_bytes)))

        kernel = functools.partial(
            _center_loss_kernel, alpha=alpha, beta=beta, eps=eps,
            rows=rows, steps=steps, tm=tm, need_mask=need_mask)

        loss_parts, npos_parts = pl.pallas_call(
            kernel,
            out_shape=(jax.ShapeDtypeStruct((p_eff, 1, 1), jnp.float32),
                       jax.ShapeDtypeStruct((p_eff, 1, 1), jnp.float32)),
            grid_spec=pltpu.PrefetchScalarGridSpec(
                num_scalar_prefetch=0,
                grid=(p_eff, steps),
                in_specs=[pl.BlockSpec((tm, LANES), in_index),
                          pl.BlockSpec((tm, LANES), in_index)],
                out_specs=[pl.BlockSpec((1, 1, 1), lambda p, j: (p, 0, 0)),
                           pl.BlockSpec((1, 1, 1), lambda p, j: (p, 0, 0))],
                scratch_shapes=[pltpu.VMEM((SUBLANES, LANES), jnp.float32),
                                pltpu.VMEM((SUBLANES, LANES), jnp.float32)]),
            compiler_params=pltpu.CompilerParams(
                dimension_semantics=(lead_sem, pltpu.ARBITRARY),
                vmem_limit_bytes=vmem_limit),
        )(pred2, gt2)

        loss_sum = loss_sum + jnp.sum(loss_parts)   # pos_loss + neg_loss (main part)
        num_pos = num_pos + jnp.sum(npos_parts)

    if main < total:
        # Ragged tail (< 1024 elements): tiny slices + plain jnp, no padded copies.
        tail_pred = pred_flat[main:].astype(jnp.float32)
        tail_gt = gt_flat[main:].astype(jnp.float32)
        c_t, p_t = _pointwise_terms(tail_pred, tail_gt, alpha, beta, eps)
        loss_sum = loss_sum + jnp.sum(c_t)
        num_pos = num_pos + jnp.sum(p_t)

    # PyTorch: if no positives -> loss = -neg_loss (pos part is exactly 0 then),
    #          else            -> loss = -(pos_loss + neg_loss) / num_pos.
    return jnp.where(num_pos == 0.0,
                     -loss_sum,
                     -loss_sum / jnp.maximum(num_pos, 1.0))


def center_loss_ref(preds, gt, alpha=0, beta=4, eps=1e-8):
    """Pure-JAX reference mirroring the PyTorch forward (preds is NCHW)."""
    C = preds.shape[1]
    pred = jnp.transpose(preds, (0, 2, 3, 1)).reshape(-1, C).astype(jnp.float32)
    g = gt.reshape(-1, C).astype(jnp.float32)
    pos = g == 1.0
    neg = g < 1.0
    num_pos = jnp.sum(pos.astype(jnp.float32))
    pos_loss = jnp.sum(jnp.where(
        pos, jnp.log(pred + eps) * jnp.power(1.0 - pred, float(alpha)), 0.0))
    neg_loss = jnp.sum(jnp.where(
        neg,
        jnp.log(1.0 - pred + eps)
        * jnp.power(pred, float(alpha))
        * jnp.power(1.0 - g, float(beta)),
        0.0))
    return jnp.where(num_pos == 0.0,
                     -neg_loss,
                     -(pos_loss + neg_loss) / jnp.maximum(num_pos, 1.0))


if __name__ == "__main__":
    key = jax.random.PRNGKey(0)

    def make_inputs(k, N, C, H, W, peak_prob=0.05):
        k1, k2, k3 = jax.random.split(k, 3)
        preds = jax.random.uniform(k1, (N, C, H, W), jnp.float32, 0.01, 0.99)
        base = jax.random.uniform(k2, (N, H, W, C), jnp.float32, 0.0, 0.95)
        peaks = jax.random.uniform(k3, (N, H, W, C)) < peak_prob
        gt = jnp.where(peaks, 1.0, base)
        return preds, gt

    ka, kb, kc = jax.random.split(key, 3)

    # Case 1: 1024-divisible total -> no tail, no in-kernel mask, default settings.
    preds, gt = make_inputs(ka, 2, 4, 16, 16)
    out = jax.block_until_ready(center_loss(preds, gt))
    ref = jax.block_until_ready(center_loss_ref(preds, gt))
    assert jnp.allclose(out, ref, rtol=1e-4, atol=1e-5), (out, ref)

    # Case 1b: NHWC preds fast path (no wrapper transpose at all).
    out_nhwc = jax.block_until_ready(
        center_loss(jnp.transpose(preds, (0, 2, 3, 1)), gt, preds_layout="NHWC"))
    assert jnp.allclose(out_nhwc, ref, rtol=1e-4, atol=1e-5), (out_nhwc, ref)

    # Case 2: non-divisible total -> jnp ragged tail; small block_rows -> ragged
    # last block (in-kernel column mask); num_parallel=2 -> two partial outputs.
    preds2, gt2 = make_inputs(kb, 2, 5, 24, 20)
    out2 = jax.block_until_ready(
        center_loss(preds2, gt2, block_rows=24, num_parallel=2))
    ref2 = jax.block_until_ready(center_loss_ref(preds2, gt2))
    assert jnp.allclose(out2, ref2, rtol=1e-4, atol=1e-5), (out2, ref2)

    # Case 3: no positive elements -> exercises the num_pos == 0 branch.
    preds3, _ = make_inputs(kc, 2, 4, 16, 16)
    gt3 = jax.random.uniform(jax.random.fold_in(kc, 1), (2, 16, 16, 4),
                             jnp.float32, 0.0, 0.9)
    out3 = jax.block_until_ready(center_loss(preds3, gt3))
    ref3 = jax.block_until_ready(center_loss_ref(preds3, gt3))
    assert jnp.allclose(out3, ref3, rtol=1e-4, atol=1e-5), (out3, ref3)

    print("KERNEL_OK")
</pallas_src>

<mosaic_0001>
module attributes {stable_mosaic.version = 11 : i64} {
  func.func @_center_loss_kernel(%arg0: i32, %arg1: i32, %arg2: memref<16x128xf32, #tpu.memory_space<vmem>>, %arg3: memref<16x128xf32, #tpu.memory_space<vmem>>, %arg4: memref<1x1x1xf32, #tpu.memory_space<vmem>>, %arg5: memref<1x1x1xf32, #tpu.memory_space<vmem>>, %arg6: memref<8x128xf32, #tpu.memory_space<vmem>>, %arg7: memref<8x128xf32, #tpu.memory_space<vmem>>) attributes {dimension_semantics = [#tpu.dimension_semantics<arbitrary>, #tpu.dimension_semantics<arbitrary>], iteration_bounds = array<i64: 1, 1>, scalar_prefetch = 0 : i64, scratch_operands = 2 : i64, tpu.core_type = #tpu.core_type<tc>, window_params = [{transform_indices = @transform_0, window_bounds = array<i64: 16, 128>}, {transform_indices = @transform_1, window_bounds = array<i64: 16, 128>}, {transform_indices = @transform_2, window_bounds = array<i64: 1, 1, 1>}, {transform_indices = @transform_3, window_bounds = array<i64: 1, 1, 1>}]} {
    %c0_i32 = arith.constant 0 : i32
    %0 = arith.cmpi eq, %arg1, %c0_i32 : i32
    %1 = arith.extui %0 : i1 to i32
    %c0_i32_0 = arith.constant 0 : i32
    %2 = arith.cmpi ne, %1, %c0_i32_0 : i32
    scf.if %2 {
      %cst_21 = arith.constant 0.000000e+00 : f32
      %38 = vector.broadcast %cst_21 : f32 to vector<8x128xf32>
      %c0_22 = arith.constant 0 : index
      %c0_23 = arith.constant 0 : index
      %39 = vector.load %arg6[%c0_22, %c0_23] : memref<8x128xf32, #tpu.memory_space<vmem>>, vector<8x128xf32>
      tpu.vector_store %arg6[%c0_22, %c0_23], %38 {strides = array<i32>} : memref<8x128xf32, #tpu.memory_space<vmem>>, vector<8x128xf32>,
      %cst_24 = arith.constant 0.000000e+00 : f32
      %40 = vector.broadcast %cst_24 : f32 to vector<8x128xf32>
      %c0_25 = arith.constant 0 : index
      %c0_26 = arith.constant 0 : index
      %41 = vector.load %arg7[%c0_25, %c0_26] : memref<8x128xf32, #tpu.memory_space<vmem>>, vector<8x128xf32>
      tpu.vector_store %arg7[%c0_25, %c0_26], %40 {strides = array<i32>} : memref<8x128xf32, #tpu.memory_space<vmem>>, vector<8x128xf32>,
    } else {
    }
    %c0 = arith.constant 0 : index
    %c0_1 = arith.constant 0 : index
    %3 = vector.load %arg2[%c0, %c0_1] : memref<16x128xf32, #tpu.memory_space<vmem>>, vector<16x128xf32>
    %c0_2 = arith.constant 0 : index
    %c0_3 = arith.constant 0 : index
    %4 = vector.load %arg3[%c0_2, %c0_3] : memref<16x128xf32, #tpu.memory_space<vmem>>, vector<16x128xf32>
    %cst = arith.constant 1.000000e+00 : f32
    %5 = vector.broadcast %cst : f32 to vector<16x128xf32>
    %6 = arith.cmpf oeq, %4, %5 : vector<16x128xf32>
    %cst_4 = arith.constant 1.000000e+00 : f32
    %7 = vector.broadcast %cst_4 : f32 to vector<16x128xf32>
    %8 = arith.cmpf olt, %4, %7 : vector<16x128xf32>
    %cst_5 = arith.constant 1.000000e+00 : f32
    %9 = vector.broadcast %cst_5 : f32 to vector<16x128xf32>
    %10 = arith.subf %9, %3 : vector<16x128xf32>
    %11 = arith.select %6, %3, %10 : vector<16x128xi1>, vector<16x128xf32>
    %cst_6 = arith.constant 9.99999993E-9 : f32
    %12 = vector.broadcast %cst_6 : f32 to vector<16x128xf32>
    %13 = arith.addf %11, %12 : vector<16x128xf32>
    %14 = math.log %13 : vector<16x128xf32>
    %cst_7 = arith.constant 1.000000e+00 : f32
    %15 = vector.broadcast %cst_7 : f32 to vector<16x128xf32>
    %16 = arith.subf %15, %4 : vector<16x128xf32>
    %17 = arith.mulf %16, %16 : vector<16x128xf32>
    %18 = arith.mulf %17, %17 : vector<16x128xf32>
    %19 = arith.mulf %14, %18 : vector<16x128xf32>
    %cst_8 = arith.constant 0.000000e+00 : f32
    %20 = vector.broadcast %cst_8 : f32 to vector<16x128xf32>
    %21 = arith.select %8, %19, %20 : vector<16x128xi1>, vector<16x128xf32>
    %22 = arith.select %6, %14, %21 : vector<16x128xi1>, vector<16x128xf32>
    %23 = arith.extui %6 : vector<16x128xi1> to vector<16x128xi32>
    %24 = arith.sitofp %23 : vector<16x128xi32> to vector<16x128xf32>
    %c0_9 = arith.constant 0 : index
    %c0_10 = arith.constant 0 : index
    %25 = vector.load %arg6[%c0_9, %c0_10] : memref<8x128xf32, #tpu.memory_space<vmem>>, vector<8x128xf32>
    %26 = vector.shape_cast %22 : vector<16x128xf32> to vector<2x8x128xf32>
    %cst_11 = arith.constant dense<0.000000e+00> : vector<8x128xf32>
    %27 = vector.multi_reduction <add>, %26, %cst_11 [0] : vector<2x8x128xf32> to vector<8x128xf32>
    %28 = arith.addf %25, %27 : vector<8x128xf32>
    %c0_12 = arith.constant 0 : index
    %c0_13 = arith.constant 0 : index
    %29 = vector.load %arg6[%c0_12, %c0_13] : memref<8x128xf32, #tpu.memory_space<vmem>>, vector<8x128xf32>
    tpu.vector_store %arg6[%c0_12, %c0_13], %28 {strides = array<i32>} : memref<8x128xf32, #tpu.memory_space<vmem>>, vector<8x128xf32>,
    %c0_14 = arith.constant 0 : index
    %c0_15 = arith.constant 0 : index
    %30 = vector.load %arg7[%c0_14, %c0_15] : memref<8x128xf32, #tpu.memory_space<vmem>>, vector<8x128xf32>
    %31 = vector.shape_cast %24 : vector<16x128xf32> to vector<2x8x128xf32>
    %cst_16 = arith.constant dense<0.000000e+00> : vector<8x128xf32>
    %32 = vector.multi_reduction <add>, %31, %cst_16 [0] : vector<2x8x128xf32> to vector<8x128xf32>
    %33 = arith.addf %30, %32 : vector<8x128xf32>
    %c0_17 = arith.constant 0 : index
    %c0_18 = arith.constant 0 : index
    %34 = vector.load %arg7[%c0_17, %c0_18] : memref<8x128xf32, #tpu.memory_space<vmem>>, vector<8x128xf32>
    tpu.vector_store %arg7[%c0_17, %c0_18], %33 {strides = array<i32>} : memref<8x128xf32, #tpu.memory_space<vmem>>, vector<8x128xf32>,
    %c0_i32_19 = arith.constant 0 : i32
    %35 = arith.cmpi eq, %arg1, %c0_i32_19 : i32
    %36 = arith.extui %35 : i1 to i32
    %c0_i32_20 = arith.constant 0 : i32
    %37 = arith.cmpi ne, %36, %c0_i32_20 : i32
    scf.if %37 {
      %c0_21 = arith.constant 0 : index
      %c0_22 = arith.constant 0 : index
      %38 = vector.load %arg6[%c0_21, %c0_22] : memref<8x128xf32, #tpu.memory_space<vmem>>, vector<8x128xf32>
      %39 = vector.shape_cast %38 : vector<8x128xf32> to vector<1x8x128xf32>
      %cst_23 = arith.constant dense<0.000000e+00> : vector<1xf32>
      %40 = vector.multi_reduction <add>, %39, %cst_23 [1, 2] : vector<1x8x128xf32> to vector<1xf32>
      %41 = vector.shape_cast %40 : vector<1xf32> to vector<1x1x1xf32>
      %42 = vector.extract %41[0, 0, 0] : f32 from vector<1x1x1xf32>
      %43 = vector.broadcast %42 : f32 to vector<1x1x1xf32>
      %c0_24 = arith.constant 0 : index
      %c0_25 = arith.constant 0 : index
      %c0_26 = arith.constant 0 : index
      %44 = vector.load %arg4[%c0_24, %c0_25, %c0_26] : memref<1x1x1xf32, #tpu.memory_space<vmem>>, vector<1x1x1xf32>
      tpu.vector_store %arg4[%c0_24, %c0_25, %c0_26], %43 {strides = array<i32>} : memref<1x1x1xf32, #tpu.memory_space<vmem>>, vector<1x1x1xf32>,
      %c0_27 = arith.constant 0 : index
      %c0_28 = arith.constant 0 : index
      %45 = vector.load %arg7[%c0_27, %c0_28] : memref<8x128xf32, #tpu.memory_space<vmem>>, vector<8x128xf32>
      %46 = vector.shape_cast %45 : vector<8x128xf32> to vector<1x8x128xf32>
      %cst_29 = arith.constant dense<0.000000e+00> : vector<1xf32>
      %47 = vector.multi_reduction <add>, %46, %cst_29 [1, 2] : vector<1x8x128xf32> to vector<1xf32>
      %48 = vector.shape_cast %47 : vector<1xf32> to vector<1x1x1xf32>
      %49 = vector.extract %48[0, 0, 0] : f32 from vector<1x1x1xf32>
      %50 = vector.broadcast %49 : f32 to vector<1x1x1xf32>
      %c0_30 = arith.constant 0 : index
      %c0_31 = arith.constant 0 : index
      %c0_32 = arith.constant 0 : index
      %51 = vector.load %arg5[%c0_30, %c0_31, %c0_32] : memref<1x1x1xf32, #tpu.memory_space<vmem>>, vector<1x1x1xf32>
      tpu.vector_store %arg5[%c0_30, %c0_31, %c0_32], %50 {strides = array<i32>} : memref<1x1x1xf32, #tpu.memory_space<vmem>>, vector<1x1x1xf32>,
    } else {
    }
    return
  }
  func.func @transform_0(%arg0: i32, %arg1: i32) -> (i32, i32) {
    %c1_i32 = arith.constant 1 : i32
    %0 = arith.muli %arg0, %c1_i32 : i32
    %1 = arith.addi %0, %arg1 : i32
    %c0_i32 = arith.constant 0 : i32
    %2 = arith.minsi %1, %c0_i32 : i32
    %c0_i32_0 = arith.constant 0 : i32
    %c0_i32_1 = arith.constant 0 : i32
    return %2, %c0_i32_0 : i32, i32
  }
  func.func @transform_1(%arg0: i32, %arg1: i32) -> (i32, i32) {
    %c1_i32 = arith.constant 1 : i32
    %0 = arith.muli %arg0, %c1_i32 : i32
    %1 = arith.addi %0, %arg1 : i32
    %c0_i32 = arith.constant 0 : i32
    %2 = arith.minsi %1, %c0_i32 : i32
    %c0_i32_0 = arith.constant 0 : i32
    %c0_i32_1 = arith.constant 0 : i32
    return %2, %c0_i32_0 : i32, i32
  }
  func.func @transform_2(%arg0: i32, %arg1: i32) -> (i32, i32, i32) {
    %c0_i32 = arith.constant 0 : i32
    %c0_i32_0 = arith.constant 0 : i32
    %c0_i32_1 = arith.constant 0 : i32
    return %arg0, %c0_i32, %c0_i32_0 : i32, i32, i32
  }
  func.func @transform_3(%arg0: i32, %arg1: i32) -> (i32, i32, i32) {
    %c0_i32 = arith.constant 0 : i32
    %c0_i32_0 = arith.constant 0 : i32
    %c0_i32_1 = arith.constant 0 : i32
    return %arg0, %c0_i32, %c0_i32_0 : i32, i32, i32
  }
}

</mosaic_0001>

<llo_original>
// kernel: tpu_custom_call.1
$region0: #{tpu_custom_call.1}
  #allocation0 [shape = 'u32[]', space=smem, size = 0x4, offset = 0x4, fixed_abs, tag = 'smem constant byte address 0x4 - core index']
  #allocation1 [shape = 'u32[72,128]{1,0:T(1,128)}', space=vmem, size = 0x9000, scoped, tag = 'internal scratch']
  #allocation2 [shape = 'f32[8,128]{1,0:T(8,128)}', space=vmem, size = 0x1000, scoped, tag = 'scratch operand']
  #allocation3 [shape = 'f32[8,128]{1,0:T(8,128)}', space=vmem, size = 0x1000, scoped, tag = 'scratch operand']
  %s0 = inlined_call_operand.hbm [shape: f32[16,128], index: 0, kind: input, shape index: {}]
  %s1 = inlined_call_operand.hbm [shape: f32[16,128], index: 1, kind: input, shape index: {}]
  %s2 = inlined_call_operand.hbm [shape: f32[1,1,1], index: 2, kind: output, shape index: {0}]
  %s3 = inlined_call_operand.hbm [shape: f32[1,1,1], index: 3, kind: output, shape index: {1}]
  %4 = xla_tuple %s2, %s3
  %s5 = sld [smem:[#allocation0]]
  $region42: #{tpu_custom_call.1} parent=0
    _
  %s7 = ssub.s32 1, %s5
  %s8 = scalar_select 0, %s7, %s5
  $region1: #{tpu_custom_call.1} parent=0
    #allocation4 [shape = 'u8[8192]{0}', space=vmem, size = 0x2000, scoped, tag = 'input window, operand 0, single buffered']
    #allocation5 [shape = 's32[1]{0}', space=sflag, size = 0x4, scoped, tag = 'scoped memory for tpu_custom_call.1']
    #allocation6 [shape = 's32[1]{0}', space=sflag, size = 0x4, scoped, tag = 'scoped memory for tpu_custom_call.1']
    #allocation7 [shape = 'u8[8192]{0}', space=vmem, size = 0x2000, scoped, tag = 'input window, operand 1, single buffered']
    #allocation8 [shape = 's32[1]{0}', space=sflag, size = 0x4, scoped, tag = 'scoped memory for tpu_custom_call.1']
    #allocation9 [shape = 'u8[512]{0}', space=vmem, size = 0x400, scoped, tag = 'output window, operand 0, single buffered']
    #allocation10 [shape = 'u8[512]{0}', space=vmem, size = 0x400, scoped, tag = 'output window, operand 1, single buffered']
    #allocation11 [shape = 's32[1]{0}', space=sflag, size = 0x4, scoped, tag = 'scoped memory for tpu_custom_call.1']
    %9 = vsyncpa [#allocation5], 0
    %10 = vsyncpa [#allocation8], 0
    %11 = vsyncpa [#allocation6], 0
    %12 = vsyncpa [#allocation11], 0
    // Predicated region
    $region2: #{tpu_custom_call.1} parent=1 // pred_check
      _
    $region3: #{tpu_custom_call.1} parent=1 // pred_check_branch
      %14 = sbr.rel (0) target = $region5
    $region4: #{tpu_custom_call.1} parent=1 // pred_region
      %s15 = sadd.s32 0, 0
      %p16 = scmp.lt.s32.totalorder %s15, 0
      %s17 = scalar_select %p16, %s15, 0
      %s18 = smul.u32 2, %s17
      %20 = vsyncadd [#allocation5], 0
      %s21 = smul.addr %s18, 8
      %s22 = scalar_lea.hbm %s0, %s21
      %s23 = sshll.u32 %s22, 4
      %s24 = int_to_ptr.hbm [resolvable:$true] %s23
      %s25 = sshll.u32 [#allocation4], 4
      %s26 = int_to_ptr.vmem [resolvable:$true] %s25
      %31 = dma.hbm_to_vmem [thread:$0]  %s24, 256, %s26, [#allocation5], 128, 128, 8
    $region5: #{tpu_custom_call.1} parent=1 // pred_fallthru
      _
    // Predicated region
    $region6: #{tpu_custom_call.1} parent=1 // pred_check
      _
    $region7: #{tpu_custom_call.1} parent=1 // pred_check_branch
      %33 = sbr.rel (0) target = $region9
    $region8: #{tpu_custom_call.1} parent=1 // pred_region
      %s34 = sadd.s32 0, 0
      %p35 = scmp.lt.s32.totalorder %s34, 0
      %s36 = scalar_select %p35, %s34, 0
      %s37 = smul.u32 2, %s36
      %39 = vsyncadd [#allocation8], 0
      %s40 = smul.addr %s37, 8
      %s41 = scalar_lea.hbm %s1, %s40
      %s42 = sshll.u32 %s41, 4
      %s43 = int_to_ptr.hbm [resolvable:$true] %s42
      %s44 = sshll.u32 [#allocation7], 4
      %s45 = int_to_ptr.vmem [resolvable:$true] %s44
      %50 = dma.hbm_to_vmem [thread:$0]  %s43, 256, %s45, [#allocation8], 128, 128, 8
    $region9: #{tpu_custom_call.1} parent=1 // pred_fallthru
      _
    // Predicated region
    $region10: #{tpu_custom_call.1} parent=1 // pred_check
      _
    $region11: #{tpu_custom_call.1} parent=1 // pred_check_branch
      %52 = sbr.rel (0) target = $region13
    $region12: #{tpu_custom_call.1} parent=1 // pred_region
      %54 = dma.done [#allocation5], 256
    $region13: #{tpu_custom_call.1} parent=1 // pred_fallthru
      _
    // Predicated region
    $region14: #{tpu_custom_call.1} parent=1 // pred_check
      _
    $region15: #{tpu_custom_call.1} parent=1 // pred_check_branch
      %56 = sbr.rel (0) target = $region17
    $region16: #{tpu_custom_call.1} parent=1 // pred_region
      %58 = dma.done [#allocation8], 256
    $region17: #{tpu_custom_call.1} parent=1 // pred_fallthru
      _
    %s59 = sadd.s32 0, 0
    %p60 = scmp.lt.s32.totalorder %s59, 0
    %s61 = scalar_select %p60, %s59, 0
    %s62 = smul.u32 2, %s61
    %s63 = sadd.s32 0, 0
    %p64 = scmp.lt.s32.totalorder %s63, 0
    %s65 = scalar_select %p64, %s63, 0
    %s66 = smul.u32 2, %s65
    %p67 = scmp.eq.s32.totalorder 0, 0
    // Predicated region
    $region18: #{tpu_custom_call.1} parent=1 // pred_check
      %p68 = pneg %p67
    $region19: #{tpu_custom_call.1} parent=1 // pred_check_branch
      %70 = sbr.rel (%p68) target = $region21
    $region20: #{tpu_custom_call.1} parent=1 // pred_region
      %71 = vst [vmem:[#allocation2] sm:$0xff] 0.0
      %72 = vst [vmem:[#allocation3] sm:$0xff] 0.0
    $region21: #{tpu_custom_call.1} parent=1 // pred_fallthru
      _
    %v73 = vld [vmem:[#allocation4] sm:$0xff]
    %v74 = vld [vmem:[#allocation4 + $0x8] sm:$0xff]
    %v75 = vld [vmem:[#allocation7] sm:$0xff]
    %v76 = vld [vmem:[#allocation7 + $0x8] sm:$0xff]
    %vm77 = vcmp.eq.f32.partialorder %v75, 1.0
    %vm78 = vcmp.eq.f32.partialorder %v76, 1.0
    %vm79 = vcmp.lt.f32.partialorder %v75, 1.0
    %vm80 = vcmp.lt.f32.partialorder %v76, 1.0
    %v81 = vsub.f32 1.0, %v73
    %v82 = vsub.f32 1.0, %v74
    %v83 = vsel %vm77, %v73, %v81
    %v84 = vsel %vm78, %v74, %v82
    %v85 = vadd.f32 %v83, 1e-08
    %v86 = vadd.f32 %v84, 1e-08
    %v87 = vlog2.pop %v85
    %v88 = vmul.f32 %v87, 0.6931472
    %v89 = vlog2.pop %v86
    %v90 = vmul.f32 %v89, 0.6931472
    %v91 = vsub.f32 1.0, %v75
    %v92 = vsub.f32 1.0, %v76
    %v93 = vmul.f32 %v91, %v91
    %v94 = vmul.f32 %v92, %v92
    %v95 = vmul.f32 %v93, %v93
    %v96 = vmul.f32 %v94, %v94
    %v97 = vmul.f32 %v88, %v95
    %v98 = vmul.f32 %v90, %v96
    %v99 = vsel %vm79, %v97, 0.0
    %v100 = vsel %vm80, %v98, 0.0
    %v101 = vsel %vm77, %v88, %v99
    %v102 = vsel %vm78, %v90, %v100
    %v103 = vsel %vm77, 1, 0
    %v104 = vsel %vm78, 1, 0
    %v105 = vcvt.s32.f32 %v103
    %v106 = vcvt.s32.f32 %v104
    %v107 = vld [vmem:[#allocation2] sm:$0xff]
    %v108 = vadd.f32 %v101, %v102
    %v109 = vadd.f32 %v107, %v108
    %110 = vst [vmem:[#allocation2] sm:$0xff] %v109
    %v111 = vld [vmem:[#allocation3] sm:$0xff]
    %v112 = vadd.f32 %v105, %v106
    %v113 = vadd.f32 %v111, %v112
    %114 = vst [vmem:[#allocation3] sm:$0xff] %v113
    // Predicated region
    $region22: #{tpu_custom_call.1} parent=1 // pred_check
      %p115 = pneg %p67
    $region23: #{tpu_custom_call.1} parent=1 // pred_check_branch
      %117 = sbr.rel (%p115) target = $region25
    $region24: #{tpu_custom_call.1} parent=1 // pred_region
      %v118 = vld [vmem:[#allocation2] sm:$0xff]
      %119 = vadd.xlane.f32.xlu0 %v118
      %v120 = vpop.xlane.xlu0 %119
      %v121 = vrot.slane %v120, 4
      %v122 = vadd.f32 %v120, %v121
      %v123 = vrot.slane %v122, 2
      %v124 = vadd.f32 %v122, %v123
      %v125 = vrot.slane %v124, 1
      %v126 = vadd.f32 %v124, %v125
      %s127 = vtos %v126
      %v128 = vstv %s127
      %vm129 = vcmask 0
      %130 = vst.msk [vmem:[#allocation9] sm:$0x1] %vm129, %v128
      %v131 = vld [vmem:[#allocation3] sm:$0xff]
      %132 = vadd.xlane.f32.xlu0 %v131
      %v133 = vpop.xlane.xlu0 %132
      %v134 = vrot.slane %v133, 4
      %v135 = vadd.f32 %v133, %v134
      %v136 = vrot.slane %v135, 2
      %v137 = vadd.f32 %v135, %v136
      %v138 = vrot.slane %v137, 1
      %v139 = vadd.f32 %v137, %v138
      %s140 = vtos %v139
      %v141 = vstv %s140
      %142 = vst.msk [vmem:[#allocation10] sm:$0x1] %vm129, %v141
    $region25: #{tpu_custom_call.1} parent=1 // pred_fallthru
      _
    // Predicated region
    $region26: #{tpu_custom_call.1} parent=1 // pred_check
      _
    $region27: #{tpu_custom_call.1} parent=1 // pred_check_branch
      %144 = sbr.rel (0) target = $region29
    $region28: #{tpu_custom_call.1} parent=1 // pred_region
      %146 = vsyncadd [#allocation6], 0
      %s148 = sshll.u32 [#allocation9], 4
      %s149 = int_to_ptr.vmem [resolvable:$true] %s148
      %s150 = sshll.u32 %s2, 4
      %s151 = int_to_ptr.hbm [resolvable:$true] %s150
      %153 = dma.vmem_to_hbm [thread:$0]  %s149, 16, %s151, [#allocation6]
    $region29: #{tpu_custom_call.1} parent=1 // pred_fallthru
      _
    // Predicated region
    $region30: #{tpu_custom_call.1} parent=1 // pred_check
      _
    $region31: #{tpu_custom_call.1} parent=1 // pred_check_branch
      %155 = sbr.rel (0) target = $region33
    $region32: #{tpu_custom_call.1} parent=1 // pred_region
      %157 = vsyncadd [#allocation11], 0
      %s159 = sshll.u32 [#allocation10], 4
      %s160 = int_to_ptr.vmem [resolvable:$true] %s159
      %s161 = sshll.u32 %s3, 4
      %s162 = int_to_ptr.hbm [resolvable:$true] %s161
      %164 = dma.vmem_to_hbm [thread:$0]  %s160, 16, %s162, [#allocation11]
    $region33: #{tpu_custom_call.1} parent=1 // pred_fallthru
      _
    // Predicated region
    $region34: #{tpu_custom_call.1} parent=1 // pred_check
      _
    $region35: #{tpu_custom_call.1} parent=1 // pred_check_branch
      %166 = sbr.rel (0) target = $region37
    $region36: #{tpu_custom_call.1} parent=1 // pred_region
      %168 = dma.done [#allocation6], 16
    $region37: #{tpu_custom_call.1} parent=1 // pred_fallthru
      _
    // Predicated region
    $region38: #{tpu_custom_call.1} parent=1 // pred_check
      _
    $region39: #{tpu_custom_call.1} parent=1 // pred_check_branch
      %170 = sbr.rel (0) target = $region41
    $region40: #{tpu_custom_call.1} parent=1 // pred_region
      %172 = dma.done [#allocation11], 16
    $region41: #{tpu_custom_call.1} parent=1 // pred_fallthru
      _
    %173 = vsyncpa [#allocation5], 1
    %174 = vsyncpa [#allocation8], 1
    %175 = vsyncpa [#allocation6], 1
    %176 = vsyncpa [#allocation11], 1

</llo_original>
